<compile_context>
chip_gen: v6e
topology: v6e:2x2x1
jax: 0.10.0
libtpu: 0.0.40
codegen_flags: <defaults>
</compile_context>

<pallas_src>
import math

import numpy as np
import jax
import jax.numpy as jnp
from jax.experimental import pallas as pl
from jax.experimental.pallas import tpu as pltpu

_MAX_TG = 8192   # max lane tile (grid points) per step
_LANE = 128


# ----------------------------- Pallas kernel ------------------------------ #
def _setconv_kernel(off_ref, xc_ref, ycT_ref, z_ref):
    # off_ref : (dx, TG)     scaled grid-point offsets (lane = grid point)
    # xc_ref  : (1, nc, dx)  scaled & batch-centered context inputs
    # ycT_ref : (1, dy1, nc) context outputs (ones channel appended), transposed
    # z_ref   : (1, dy1, TG) output tile (lane = grid point)
    dx = off_ref.shape[0]
    xc = xc_ref[0]                                     # (nc, dx)

    acc = None
    for d in range(dx):                                # dx is tiny (1-3): unroll
        diff = off_ref[d:d + 1, :] - xc[:, d:d + 1]    # (1,TG)-(nc,1) -> (nc,TG)
        sq = diff * diff
        acc = sq if acc is None else acc + sq
    w = jnp.exp(-acc)                                  # (nc, TG) EQ weights

    # z_T = yc1^T @ w  -> (dy1, TG), lane-dense store
    z_ref[0] = jnp.dot(ycT_ref[0], w,
                       preferred_element_type=jnp.float32).astype(z_ref.dtype)


def setconv_pallas(off_sT, xc_c, ycT, tg):
    """z_T[b] = yc1T[b] @ exp(-sum_d (off_s[d,:] - xc_c[b,:,d])^2)."""
    dx, ngp = off_sT.shape
    m, nc, _ = xc_c.shape
    dy1 = ycT.shape[1]
    assert ngp % tg == 0

    return pl.pallas_call(
        _setconv_kernel,
        out_shape=jax.ShapeDtypeStruct((m, dy1, ngp), jnp.float32),
        grid=(m, ngp // tg),
        in_specs=[
            pl.BlockSpec((dx, tg), lambda b, g: (0, g)),     # grid offsets (batch-free)
            pl.BlockSpec((1, nc, dx), lambda b, g: (b, 0, 0)),   # centered+scaled xc
            pl.BlockSpec((1, dy1, nc), lambda b, g: (b, 0, 0)),  # yc1 transposed
        ],
        out_specs=pl.BlockSpec((1, dy1, tg), lambda b, g: (b, 0, g)),
        compiler_params=pltpu.CompilerParams(
            dimension_semantics=("parallel", "parallel")),
    )(off_sT, xc_c, ycT)


# --------------------------- grid construction ----------------------------- #
def _num_points_per_dim(xmin_np, xmax_np, points_per_unit, margin):
    num_points = np.ceil((0.5 * (xmax_np - xmin_np) + margin) * points_per_unit)
    num_points = num_points.max(axis=0)                       # (dim,)
    num_points = 2.0 ** np.ceil(np.log(num_points) / math.log(2.0))
    return [int(n) for n in num_points]


def _choose_tile(ng, m):
    n_tiles = max(1, math.ceil(ng / _MAX_TG))
    if m == 1 and ng > 2 * _LANE:
        n_tiles = max(n_tiles, 2)     # keep a >=2-way parallel axis (v7x megacore)
    tg = math.ceil(math.ceil(ng / n_tiles) / _LANE) * _LANE
    return tg, n_tiles * tg


# --------------------------- SetConvEncoder fwd ---------------------------- #
def setconv_encoder_forward(xc, yc, xt, *, init_lengthscale, margin,
                            points_per_unit):
    m, nc, dx = xc.shape
    dy = yc.shape[-1]

    # deterministic parameter init matching the module's __init__ / property
    init = jnp.full((dx,), init_lengthscale, dtype=jnp.float32)
    lengthscale_param = jnp.log(jnp.exp(init) - 1.0)
    lengthscale = 1e-5 + jax.nn.softplus(lengthscale_param)            # (dx,)

    # ones channel appended to yc, transposed so nc is the contraction dim
    yc1 = jnp.concatenate(
        [yc, jnp.ones(yc.shape[:-1] + (1,), yc.dtype)], axis=-1)       # (m, nc, dy+1)
    ycT = jnp.swapaxes(yc1, 1, 2)                                      # (m, dy+1, nc)

    # adaptive grid: only min/max (tiny) go to host to fix the static shape.
    x_all = jnp.concatenate([xc, xt], axis=-2)
    xmin = jnp.min(x_all, axis=-2)                                     # (m, dx)
    xmax = jnp.max(x_all, axis=-2)
    # TODO(synk): host sync for the data-dependent grid size is unavoidable
    # (dynamic output shape); it only transfers 2*m*dx floats.
    num_points = _num_points_per_dim(np.asarray(xmin), np.asarray(xmax),
                                     points_per_unit, margin)
    dims = tuple(2 * n + 1 for n in num_points)
    ng = int(np.prod(dims))
    tg, ngp = _choose_tile(ng, m)

    # batch-independent grid offsets, built on device (no host grid / H2D copy)
    axes = [jnp.arange(-n, n + 1, dtype=jnp.float32) for n in num_points]
    mesh = jnp.meshgrid(*axes, indexing="ij")
    off_T = jnp.stack(mesh, axis=0).reshape(dx, ng) / points_per_unit  # (dx, NG)
    off = jnp.stack(mesh, axis=-1) / points_per_unit                   # dims+(dx,)

    x_mid = 0.5 * (xmin + xmax)                                        # (m, dx)
    x_grid = x_mid.reshape((m,) + (1,) * dx + (dx,)) + off[None]       # (m,)+dims+(dx,)

    # fold lengthscale and the -0.5 factor into a per-dim scale, and fold the
    # per-batch grid center into xc so the kernel's grid table stays batch-free.
    s = jnp.sqrt(jnp.float32(0.5)) / lengthscale                       # (dx,)
    off_sT = jnp.pad(off_T * s[:, None], ((0, 0), (0, ngp - ng)))      # (dx, NGP)
    xc_c = (xc - x_mid[:, None, :]) * s[None, None, :]                 # (m, nc, dx)

    z_T = setconv_pallas(off_sT, xc_c, ycT, tg)                        # (m, dy+1, NGP)
    # padded lanes are discarded here; keep this slice.
    z_grid = jnp.swapaxes(z_T[:, :, :ng], 1, 2).reshape((m,) + dims + (dy + 1,))
    return x_grid, z_grid


# pure-JAX reference for the in-kernel compute (weights + matmul)
def _reference_z(x_grid_flat, xc, yc1, lengthscale):
    x1 = x_grid_flat[:, :, None, :]
    x2 = xc[:, None, :, :]
    d2 = jnp.sum(((x1 - x2) / lengthscale) ** 2, axis=-1)
    w = jnp.exp(-0.5 * d2)
    return jnp.einsum("bgc,bcd->bgd", w, yc1)


if __name__ == "__main__":
    key = jax.random.PRNGKey(0)
    k1, k2, k3 = jax.random.split(key, 3)

    m, nc, nt, dx, dy = 2, 8, 8, 2, 3
    init_lengthscale, margin, points_per_unit = 0.2, 0.1, 4

    xc = jax.random.uniform(k1, (m, nc, dx), jnp.float32, -1.0, 1.0)
    xt = jax.random.uniform(k2, (m, nt, dx), jnp.float32, -1.0, 1.0)
    yc = jax.random.normal(k3, (m, nc, dy), jnp.float32)

    x_grid, z_grid = setconv_encoder_forward(
        xc, yc, xt,
        init_lengthscale=init_lengthscale,
        margin=margin,
        points_per_unit=points_per_unit)
    jax.block_until_ready((x_grid, z_grid))

    # check against a pure-JAX reference
    init = jnp.full((dx,), init_lengthscale, dtype=jnp.float32)
    ls = 1e-5 + jax.nn.softplus(jnp.log(jnp.exp(init) - 1.0))
    yc1 = jnp.concatenate([yc, jnp.ones((m, nc, 1), jnp.float32)], axis=-1)
    xg_flat = x_grid.reshape(m, -1, dx)
    z_ref = _reference_z(xg_flat, xc, yc1, ls).reshape(z_grid.shape)
    assert z_grid.shape == x_grid.shape[:-1] + (dy + 1,)
    assert jnp.allclose(z_grid, z_ref, atol=1e-4, rtol=1e-4), "mismatch vs reference"

    print("KERNEL_OK")
</pallas_src>

<mosaic_0001>
module attributes {stable_mosaic.version = 11 : i64} {
  func.func @_setconv_kernel(%arg0: i32, %arg1: i32, %arg2: memref<2x384xf32, #tpu.memory_space<vmem>>, %arg3: memref<1x8x2xf32, #tpu.memory_space<vmem>>, %arg4: memref<1x4x8xf32, #tpu.memory_space<vmem>>, %arg5: memref<1x4x384xf32, #tpu.memory_space<vmem>>) attributes {dimension_semantics = [#tpu.dimension_semantics<parallel>, #tpu.dimension_semantics<parallel>], iteration_bounds = array<i64: 2, 1>, scalar_prefetch = 0 : i64, scratch_operands = 0 : i64, tpu.core_type = #tpu.core_type<tc>, window_params = [{transform_indices = @transform_0, window_bounds = array<i64: 2, 384>}, {transform_indices = @transform_1, window_bounds = array<i64: 1, 8, 2>}, {transform_indices = @transform_2, window_bounds = array<i64: 1, 4, 8>}, {transform_indices = @transform_3, window_bounds = array<i64: 1, 4, 384>}]} {
    %c0 = arith.constant 0 : index
    %c0_0 = arith.constant 0 : index
    %c0_1 = arith.constant 0 : index
    %0 = vector.load %arg3[%c0, %c0_0, %c0_1] : memref<1x8x2xf32, #tpu.memory_space<vmem>>, vector<1x8x2xf32>
    %1 = vector.shape_cast %0 : vector<1x8x2xf32> to vector<8x2xf32>
    %c0_2 = arith.constant 0 : index
    %c0_3 = arith.constant 0 : index
    %2 = vector.load %arg2[%c0_2, %c0_3] : memref<2x384xf32, #tpu.memory_space<vmem>>, vector<1x384xf32>
    %3 = vector.extract_strided_slice %1 {offsets = [0, 0], sizes = [8, 1], strides = [1, 1]} : vector<8x2xf32> to vector<8x1xf32>
    %4 = vector.broadcast %2 : vector<1x384xf32> to vector<8x384xf32>
    %5 = vector.broadcast %3 : vector<8x1xf32> to vector<8x384xf32>
    %6 = arith.subf %4, %5 : vector<8x384xf32>
    %7 = arith.mulf %6, %6 : vector<8x384xf32>
    %c1 = arith.constant 1 : index
    %c0_4 = arith.constant 0 : index
    %8 = vector.load %arg2[%c1, %c0_4] : memref<2x384xf32, #tpu.memory_space<vmem>>, vector<1x384xf32>
    %9 = vector.extract_strided_slice %1 {offsets = [0, 1], sizes = [8, 1], strides = [1, 1]} : vector<8x2xf32> to vector<8x1xf32>
    %10 = vector.broadcast %8 : vector<1x384xf32> to vector<8x384xf32>
    %11 = vector.broadcast %9 : vector<8x1xf32> to vector<8x384xf32>
    %12 = arith.subf %10, %11 : vector<8x384xf32>
    %13 = arith.mulf %12, %12 : vector<8x384xf32>
    %14 = arith.addf %7, %13 : vector<8x384xf32>
    %cst = arith.constant 0.000000e+00 : f32
    %15 = vector.broadcast %cst : f32 to vector<8x384xf32>
    %16 = arith.subf %15, %14 : vector<8x384xf32>
    %17 = math.exp %16 : vector<8x384xf32>
    %c0_5 = arith.constant 0 : index
    %c0_6 = arith.constant 0 : index
    %c0_7 = arith.constant 0 : index
    %18 = vector.load %arg4[%c0_5, %c0_6, %c0_7] : memref<1x4x8xf32, #tpu.memory_space<vmem>>, vector<1x4x8xf32>
    %19 = vector.shape_cast %18 : vector<1x4x8xf32> to vector<4x8xf32>
    %cst_8 = arith.constant dense<0.000000e+00> : vector<4x384xf32>
    %20 = tpu.matmul %19, %17, %cst_8 {dimension_numbers = #tpu.dot_dimension_numbers<[1], [0], [0], [1], [0, 0, 1, 1], [], []>} : vector<4x8xf32>, vector<8x384xf32>, vector<4x384xf32> -> vector<4x384xf32>
    %c0_9 = arith.constant 0 : index
    %c0_10 = arith.constant 0 : index
    %c0_11 = arith.constant 0 : index
    %21 = vector.load %arg5[%c0_9, %c0_10, %c0_11] : memref<1x4x384xf32, #tpu.memory_space<vmem>>, vector<1x4x384xf32>
    %22 = vector.shape_cast %21 : vector<1x4x384xf32> to vector<4x384xf32>
    %23 = vector.shape_cast %20 : vector<4x384xf32> to vector<1x4x384xf32>
    tpu.vector_store %arg5[%c0_9, %c0_10, %c0_11], %23 {strides = array<i32>} : memref<1x4x384xf32, #tpu.memory_space<vmem>>, vector<1x4x384xf32>,
    return
  }
  func.func @transform_0(%arg0: i32, %arg1: i32) -> (i32, i32) {
    %c0_i32 = arith.constant 0 : i32
    %c0_i32_0 = arith.constant 0 : i32
    return %c0_i32, %arg1 : i32, i32
  }
  func.func @transform_1(%arg0: i32, %arg1: i32) -> (i32, i32, i32) {
    %c0_i32 = arith.constant 0 : i32
    %c0_i32_0 = arith.constant 0 : i32
    %c0_i32_1 = arith.constant 0 : i32
    return %arg0, %c0_i32, %c0_i32_0 : i32, i32, i32
  }
  func.func @transform_2(%arg0: i32, %arg1: i32) -> (i32, i32, i32) {
    %c0_i32 = arith.constant 0 : i32
    %c0_i32_0 = arith.constant 0 : i32
    %c0_i32_1 = arith.constant 0 : i32
    return %arg0, %c0_i32, %c0_i32_0 : i32, i32, i32
  }
  func.func @transform_3(%arg0: i32, %arg1: i32) -> (i32, i32, i32) {
    %c0_i32 = arith.constant 0 : i32
    %c0_i32_0 = arith.constant 0 : i32
    return %arg0, %c0_i32, %arg1 : i32, i32, i32
  }
}

</mosaic_0001>

<llo_original>
// kernel: tpu_custom_call.1
$region0: #{tpu_custom_call.1}
  #allocation0 [shape = 'u32[]', space=smem, size = 0x4, offset = 0x4, fixed_abs, tag = 'smem constant byte address 0x4 - core index']
  #allocation1 [shape = 'u32[144,128]{1,0:T(1,128)}', space=vmem, size = 0x12000, scoped, tag = 'internal scratch']
  %s0 = inlined_call_operand.vmem [shape: f32[2,384], index: 0, kind: input, shape index: {}]
  %s1 = inlined_call_operand.vmem [shape: f32[2,8,2], index: 1, kind: input, shape index: {}]
  %s2 = inlined_call_operand.vmem [shape: f32[2,4,8], index: 2, kind: input, shape index: {}]
  %s3 = inlined_call_operand.hbm [shape: f32[2,4,384], index: 3, kind: output, shape index: {}]
  %s4 = sld [smem:[#allocation0]]
  $region45: #{tpu_custom_call.1} parent=0
    _
  %s6 = ssub.s32 1, %s4
  %s7 = scalar_select 0, %s6, %s4
  $region1: #{tpu_custom_call.1} parent=0
    #allocation2 [shape = 'u8[12288]{0}', space=vmem, size = 0x3000, scoped, tag = 'output window, operand 0']
    #allocation3 [shape = 's32[2]{0}', space=sflag, size = 0x8, scoped, tag = 'scoped memory for tpu_custom_call.1']
    %8 = vsyncpa [#allocation3], 0
    %s9 = scalar_lea.sflag [#allocation3], 1
    %10 = vsyncpa %s9, 0
    loop: start=0, step=1, limit=4
    $region2: #{tpu_custom_call.1} parent=1 // loop_pre_header
      _
    $region3: #{tpu_custom_call.1} parent=1 // loop_header
      %s12 = sphi 0, %s16
      %p13 = scmp.ge.s32.totalorder %s12, 4
      %s19 = sphi 0, %s31
      %s20 = sphi 0, %s27
      %s21 = sphi 0, %s19
      %s22 = sphi 0, %s20
      %s23 = sphi 0, %s21
      %s24 = sphi 0, %s22
      %s34 = sphi 0, %s36
      %s37 = sphi 0, %s34
      %s38 = sphi 0, %s37
      %s54 = sphi 0, %s38
      %s60 = sphi 0, %s62
      %s63 = sphi 0, %s60
      %s64 = sphi 0, %s63
      %s80 = sphi 0, %s64
      %s86 = sphi 0, %s88
      %s89 = sphi 0, %s86
      %s90 = sphi 0, %s89
      %s106 = sphi 0, %s90
      %s114 = sphi 0, %s116
      %s117 = sphi 0, %s114
      %s118 = sphi 0, %s117
      %s134 = sphi 0, %s118
    $region4: #{tpu_custom_call.1} parent=1 // loop_header_branch
      %15 = sbr.rel (%p13) target = $region8
    $region5: #{tpu_custom_call.1} parent=1 // loop_body
      %s17 = ssub.s32 %s12, 1
      %s18 = ssub.s32 %s12, 2
      %s25 = sadd.s32 1, %s20
      %p26 = scmp.ge.s32.totalorder %s25, 1
      %s27 = scalar_select %p26, 0, %s25
      %s28 = sadd.s32 1, %s19
      %s29 = scalar_select %p26, %s28, %s19
      %p30 = scmp.ge.s32.totalorder %s29, 2
      %s31 = scalar_select %p30, 0, %s29
      %s32 = ssub.s32 %s20, %s27
      %p33 = scmp.eq.s32.totalorder %s32, 0
      %s35 = sadd.s32 %s34, 1
      %s36 = scalar_select %p33, %s34, %s35
      %p39 = pneg %p33
      %p40 = scmp.eq.s32.totalorder %s12, 1
      %p41 = por %p39, %p40
      %p42 = scmp.ne.s32.totalorder %s34, %s37
      %p43 = scmp.eq.s32.totalorder %s12, 0
      %p44 = por %p42, %p43
      %p45 = scmp.ne.s32.totalorder %s34, %s37
      %p46 = scmp.eq.s32.totalorder %s17, 1
      %p47 = por %p45, %p46
      %p48 = scmp.ne.s32.totalorder %s37, %s38
      %p49 = scmp.eq.s32.totalorder %s17, 0
      %p50 = por %p48, %p49
      %p51 = scmp.ne.s32.totalorder %s37, %s38
      %p52 = scmp.eq.s32.totalorder %s18, 1
      %p53 = por %p51, %p52
      %p55 = scmp.ne.s32.totalorder %s38, %s54
      %p56 = scmp.eq.s32.totalorder %s18, 0
      %p57 = por %p55, %p56
      %s58 = ssub.s32 %s19, %s31
      %p59 = scmp.eq.s32.totalorder %s58, 0
      %s61 = sadd.s32 %s60, 1
      %s62 = scalar_select %p59, %s60, %s61
      %p65 = pneg %p59
      %p66 = scmp.eq.s32.totalorder %s12, 1
      %p67 = por %p65, %p66
      %p68 = scmp.ne.s32.totalorder %s60, %s63
      %p69 = scmp.eq.s32.totalorder %s12, 0
      %p70 = por %p68, %p69
      %p71 = scmp.ne.s32.totalorder %s60, %s63
      %p72 = scmp.eq.s32.totalorder %s17, 1
      %p73 = por %p71, %p72
      %p74 = scmp.ne.s32.totalorder %s63, %s64
      %p75 = scmp.eq.s32.totalorder %s17, 0
      %p76 = por %p74, %p75
      %p77 = scmp.ne.s32.totalorder %s63, %s64
      %p78 = scmp.eq.s32.totalorder %s18, 1
      %p79 = por %p77, %p78
      %p81 = scmp.ne.s32.totalorder %s64, %s80
      %p82 = scmp.eq.s32.totalorder %s18, 0
      %p83 = por %p81, %p82
      %s84 = ssub.s32 %s19, %s31
      %p85 = scmp.eq.s32.totalorder %s84, 0
      %s87 = sadd.s32 %s86, 1
      %s88 = scalar_select %p85, %s86, %s87
      %p91 = pneg %p85
      %p92 = scmp.eq.s32.totalorder %s12, 1
      %p93 = por %p91, %p92
      %p94 = scmp.ne.s32.totalorder %s86, %s89
      %p95 = scmp.eq.s32.totalorder %s12, 0
      %p96 = por %p94, %p95
      %p97 = scmp.ne.s32.totalorder %s86, %s89
      %p98 = scmp.eq.s32.totalorder %s17, 1
      %p99 = por %p97, %p98
      %p100 = scmp.ne.s32.totalorder %s89, %s90
      %p101 = scmp.eq.s32.totalorder %s17, 0
      %p102 = por %p100, %p101
      %p103 = scmp.ne.s32.totalorder %s89, %s90
      %p104 = scmp.eq.s32.totalorder %s18, 1
      %p105 = por %p103, %p104
      %p107 = scmp.ne.s32.totalorder %s90, %s106
      %p108 = scmp.eq.s32.totalorder %s18, 0
      %p109 = por %p107, %p108
      %s110 = ssub.s32 %s19, %s31
      %s111 = ssub.s32 %s20, %s27
      %s112 = sor.u32 %s110, %s111
      %p113 = scmp.eq.s32.totalorder %s112, 0
      %s115 = sadd.s32 %s114, 1
      %s116 = scalar_select %p113, %s114, %s115
      %p119 = pneg %p113
      %p120 = scmp.eq.s32.totalorder %s12, 1
      %p121 = por %p119, %p120
      %p122 = scmp.ne.s32.totalorder %s114, %s117
      %p123 = scmp.eq.s32.totalorder %s12, 0
      %p124 = por %p122, %p123
      %p125 = scmp.ne.s32.totalorder %s114, %s117
      %p126 = scmp.eq.s32.totalorder %s17, 1
      %p127 = por %p125, %p126
      %p128 = scmp.ne.s32.totalorder %s117, %s118
      %p129 = scmp.eq.s32.totalorder %s17, 0
      %p130 = por %p128, %p129
      %p131 = scmp.ne.s32.totalorder %s117, %s118
      %p132 = scmp.eq.s32.totalorder %s18, 1
      %p133 = por %p131, %p132
      %p135 = scmp.ne.s32.totalorder %s118, %s134
      %p136 = scmp.eq.s32.totalorder %s18, 0
      %p137 = por %p135, %p136
      %p138 = scmp.le.s32.totalorder 1, %s12
      %p139 = scmp.lt.s32.totalorder %s12, 3
      %p140 = pnand %p138, %p139
      %p141 = pneg %p140
      // Predicated region
      $region9: #{tpu_custom_call.1} parent=5 // pred_check
        _
      $region10: #{tpu_custom_call.1} parent=5 // pred_check_branch
        %143 = sbr.rel (%p140) target = $region12
      $region11: #{tpu_custom_call.1} parent=5 // pred_region
        %s144 = ssub.s32 %s12, 1
        // Predicated region
        $region13: #{tpu_custom_call.1} parent=11 // pred_check
          %p145 = pneg %p50
        $region14: #{tpu_custom_call.1} parent=11 // pred_check_branch
          %147 = sbr.rel (%p145) target = $region16
        $region15: #{tpu_custom_call.1} parent=11 // pred_region
          %s148 = smul.u32 3, %s22
          %p149 = scmp.lt.s32.totalorder %s148, 2
          %s150 = scalar_select %p149, %s148, 2
          %s151 = smul.addr %s150, 2
          %s152 = scalar_lea.vmem %s0, %s151
          %s153 = smul.u32 3, %s22
        $region16: #{tpu_custom_call.1} parent=11 // pred_fallthru
          _
      $region12: #{tpu_custom_call.1} parent=5 // pred_fallthru
        _
      %p154 = scmp.lt.s32.totalorder %s12, 2
      // Predicated region
      $region17: #{tpu_custom_call.1} parent=5 // pred_check
        %p155 = pneg %p154
      $region18: #{tpu_custom_call.1} parent=5 // pred_check_branch
        %157 = sbr.rel (%p155) target = $region20
      $region19: #{tpu_custom_call.1} parent=5 // pred_region
        // Predicated region
        $region21: #{tpu_custom_call.1} parent=19 // pred_check
          %p158 = pneg %p70
        $region22: #{tpu_custom_call.1} parent=19 // pred_check_branch
          %160 = sbr.rel (%p158) target = $region24
        $region23: #{tpu_custom_call.1} parent=19 // pred_region
          %p161 = scmp.lt.s32.totalorder %s19, 1
          %s162 = scalar_select %p161, %s19, 1
          %s163 = smul.addr %s162, 8
          %s164 = scalar_lea.vmem %s1, %s163
        $region24: #{tpu_custom_call.1} parent=19 // pred_fallthru
          _
        // Predicated region
        $region25: #{tpu_custom_call.1} parent=19 // pred_check
          %p165 = pneg %p96
        $region26: #{tpu_custom_call.1} parent=19 // pred_check_branch
          %167 = sbr.rel (%p165) target = $region28
        $region27: #{tpu_custom_call.1} parent=19 // pred_region
          %p168 = scmp.lt.s32.totalorder %s19, 1
          %s169 = scalar_select %p168, %s19, 1
          %s170 = smul.addr %s169, 4
          %s171 = scalar_lea.vmem %s2, %s170
        $region28: #{tpu_custom_call.1} parent=19 // pred_fallthru
          _
      $region20: #{tpu_custom_call.1} parent=5 // pred_fallthru
        _
      %p172 = scmp.le.s32.totalorder 1, %s12
      %p173 = scmp.lt.s32.totalorder %s12, 3
      %p174 = pnand %p172, %p173
      %p175 = pneg %p174
      // Predicated region
      $region29: #{tpu_custom_call.1} parent=5 // pred_check
        _
      $region30: #{tpu_custom_call.1} parent=5 // pred_check_branch
        %177 = sbr.rel (%p174) target = $region32
      $region31: #{tpu_custom_call.1} parent=5 // pred_region
        %s178 = ssub.s32 %s12, 1
        %s179 = smul.u32 3, %s22
        %p180 = scmp.lt.s32.totalorder %s179, 2
        %s181 = scalar_select %p180, %s179, 2
        %s182 = smul.addr %s181, 2
        %s183 = scalar_lea.vmem %s0, %s182
        %p184 = pneg %p50
        %p185 = pneg %p47
        %p186 = scmp.lt.s32.totalorder %s21, 1
        %s187 = scalar_select %p186, %s21, 1
        %s188 = smul.addr %s187, 8
        %s189 = scalar_lea.vmem %s1, %s188
        %p190 = pneg %p76
        %p191 = pneg %p73
        %p192 = scmp.lt.s32.totalorder %s21, 1
        %s193 = scalar_select %p192, %s21, 1
        %s194 = smul.addr %s193, 4
        %s195 = scalar_lea.vmem %s2, %s194
        %p196 = pneg %p102
        %p197 = pneg %p99
        %p198 = pneg %p130
        %p199 = pneg %p127
        %s200 = sand.u32 %s117, 1
        %s201 = scalar_lea.sflag [#allocation3], %s200
        %s202 = sand.u32 %s117, 1
        %s203 = smul.addr %s202, 12
        %s204 = scalar_lea.vmem [#allocation2], %s203
        %s205 = smul.u32 3, %s22
        %p206 = scmp.lt.s32.totalorder %s205, 2
        %s207 = scalar_select %p206, %s205, 2
        %s208 = smul.addr %s207, 2
        %s209 = scalar_lea.vmem %s0, %s208
        %s210 = smul.u32 3, %s22
        %p211 = scmp.lt.s32.totalorder %s21, 1
        %s212 = scalar_select %p211, %s21, 1
        %s213 = smul.addr %s212, 8
        %s214 = scalar_lea.vmem %s1, %s213
        %p215 = scmp.lt.s32.totalorder %s21, 1
        %s216 = scalar_select %p215, %s21, 1
        %s217 = smul.addr %s216, 4
        %s218 = scalar_lea.vmem %s2, %s217
        %s219 = smul.u32 3, %s22
        %v220 = vld [vmem:[%s214] sm:$0xff]
        %v221 = vld [vmem:[%s209] ss:$2 sm:$0x7]
        %v223 = vlaneseq
        %v224 = vshrl.u32 %v223, 7
        %v225 = vsub.s32 0, %v224
        %v226 = vrot.slane %v221, %v225
        %v227 = vlaneseq
        %v228 = vshrl.u32 %v227, 7
        %v229 = vsub.s32 1, %v228
        %v230 = vrot.slane %v221, %v229
        %v231 = vlaneseq
        %v232 = vshrl.u32 %v231, 7
        %v233 = vsub.s32 2, %v232
        %v234 = vrot.slane %v221, %v233
        %239 = vset.pattern.permute.xlu0 0
        %240 = vperm.xlu0 %239, %v220
        %v241 = vpop.permute.xlu0 %240
        %v243 = vsub.f32 %v226, %v241
        %v244 = vsub.f32 %v230, %v241
        %v245 = vsub.f32 %v234, %v241
        %v246 = vmul.f32 %v243, %v243
        %v247 = vmul.f32 %v244, %v244
        %v248 = vmul.f32 %v245, %v245
        %s249 = scalar_lea.vmem %s209, 1
        %v250 = vld [vmem:[%s249] ss:$2 sm:$0x7]
        %v252 = vlaneseq
        %v253 = vshrl.u32 %v252, 7
        %v254 = vsub.s32 0, %v253
        %v255 = vrot.slane %v250, %v254
        %v256 = vlaneseq
        %v257 = vshrl.u32 %v256, 7
        %v258 = vsub.s32 1, %v257
        %v259 = vrot.slane %v250, %v258
        %v260 = vlaneseq
        %v261 = vshrl.u32 %v260, 7
        %v262 = vsub.s32 2, %v261
        %v263 = vrot.slane %v250, %v262
        %267 = vset.pattern.permute.xlu0 1
        %268 = vperm.xlu0 %267, %v220
        %v269 = vpop.permute.xlu0 %268
        %v271 = vsub.f32 %v255, %v269
        %v272 = vsub.f32 %v259, %v269
        %v273 = vsub.f32 %v263, %v269
        %v274 = vmul.f32 %v271, %v271
        %v275 = vmul.f32 %v272, %v272
        %v276 = vmul.f32 %v273, %v273
        %v277 = vadd.f32 %v246, %v274
        %v278 = vadd.f32 %v247, %v275
        %v279 = vadd.f32 %v248, %v276
        %v280 = vsub.f32 0.0, %v277
        %v281 = vsub.f32 0.0, %v278
        %v282 = vsub.f32 0.0, %v279
        %v283 = vmul.f32 %v280, 1.442695
        %v284 = vpow.pop %v283
        %v285 = vmul.f32 %v281, 1.442695
        %v286 = vpow.pop %v285
        %v287 = vmul.f32 %v282, 1.442695
        %v288 = vpow.pop %v287
        %v289 = vld [vmem:[%s218] sm:$0xf]
        %vm290 = vcmask 64512
        %v292 = vsel %vm290, %v289, 0
        %294 = vmatprep.subr.mxu0 0.0
        %295 = vmatpush1.msra.mxu0 0.0
        %296 = vmatprep.subr.mxu0 0.0
        %297 = vmatpush1.msra.mxu0 0.0
        %298 = vmatprep.subr.mxu0 0.0
        %299 = vmatpush1.msra.mxu0 0.0
        %300 = vmatprep.subr.mxu0 0.0
        %301 = vmatpush1.msra.mxu0 0.0
        %302 = vmatprep.subr.mxu0 0.0
        %303 = vmatpush1.msra.mxu0 0.0
        %304 = vmatprep.subr.mxu0 0.0
        %305 = vmatpush1.msra.mxu0 0.0
        %306 = vmatprep.subr.mxu0 0.0
        %307 = vmatpush1.msra.mxu0 0.0
        %308 = vmatprep.subr.mxu0 0.0
        %309 = vmatpush1.msra.mxu0 0.0
        %310 = vmatprep.subr.mxu0 0.0
        %311 = vmatpush1.msra.mxu0 0.0
        %312 = vmatprep.subr.mxu0 0.0
        %313 = vmatpush1.msra.mxu0 0.0
        %314 = vmatprep.subr.mxu0 0.0
        %315 = vmatpush1.msra.mxu0 0.0
        %316 = vmatprep.subr.mxu0 0.0
        %317 = vmatpush1.msra.mxu0 0.0
        %318 = vmatprep.subr.mxu0 0.0
        %319 = vmatpush1.msra.mxu0 0.0
        %320 = vmatprep.subr.mxu0 0.0
        %321 = vmatpush1.msra.mxu0 0.0
        %322 = vmatprep.subr.mxu0 0.0
        %323 = vmatpush1.msra.mxu0 0.0
        %324 = vmatprep.subr.mxu0 %v286
        %325 = vmatpush1.msra.mxu0 %v284
        %326 = vmatprep.subr.mxu0 0.0
        %327 = vmatpush2.msra.mxu0 0.0
        %328 = vmatprep.subr.mxu0 0.0
        %329 = vmatpush2.msra.mxu0 0.0
        %330 = vmatprep.subr.mxu0 0.0
        %331 = vmatpush2.msra.mxu0 0.0
        %332 = vmatprep.subr.mxu0 0.0
        %333 = vmatpush2.msra.mxu0 0.0
        %334 = vmatprep.subr.mxu0 0.0
        %335 = vmatpush2.msra.mxu0 0.0
        %336 = vmatprep.subr.mxu0 0.0
        %337 = vmatpush2.msra.mxu0 0.0
        %338 = vmatprep.subr.mxu0 0.0
        %339 = vmatpush2.msra.mxu0 0.0
        %340 = vmatprep.subr.mxu0 0.0
        %341 = vmatpush2.msra.mxu0 0.0
        %342 = vmatprep.subr.mxu0 0.0
        %343 = vmatpush2.msra.mxu0 0.0
        %344 = vmatprep.subr.mxu0 0.0
        %345 = vmatpush2.msra.mxu0 0.0
        %346 = vmatprep.subr.mxu0 0.0
        %347 = vmatpush2.msra.mxu0 0.0
        %348 = vmatprep.subr.mxu0 0.0
        %349 = vmatpush2.msra.mxu0 0.0
        %350 = vmatprep.subr.mxu0 0.0
        %351 = vmatpush2.msra.mxu0 0.0
        %352 = vmatprep.subr.mxu0 0.0
        %353 = vmatpush2.msra.mxu0 0.0
        %354 = vmatprep.subr.mxu0 0.0
        %355 = vmatpush2.msra.mxu0 0.0
        %356 = vmatprep.subr.mxu0 0.0
        %357 = vmatpush2.msra.mxu0 0.0
        %358 = vmatprep.mubr.f32.mxu0 0.0
        %359 = vmatmul.mubr.f32.gmra.mxu0 %v292
        %v360 = vpop.f32.mrf.mxu0
        %v361 = vadd.f32 0.0, %v360
        %v362 = vpop.f32.mrf.mxu0
        %v363 = vadd.f32 0.0, %v362
        %364 = vdwg.mxu0
        %365 = vmatprep.subr.mxu0 0.0
        %366 = vmatpush1.msra.mxu0 0.0
        %367 = vmatprep.subr.mxu0 0.0
        %368 = vmatpush1.msra.mxu0 0.0
        %369 = vmatprep.subr.mxu0 0.0
        %370 = vmatpush1.msra.mxu0 0.0
        %371 = vmatprep.subr.mxu0 0.0
        %372 = vmatpush1.msra.mxu0 0.0
        %373 = vmatprep.subr.mxu0 0.0
        %374 = vmatpush1.msra.mxu0 0.0
        %375 = vmatprep.subr.mxu0 0.0
        %376 = vmatpush1.msra.mxu0 0.0
        %377 = vmatprep.subr.mxu0 0.0
        %378 = vmatpush1.msra.mxu0 0.0
        %379 = vmatprep.subr.mxu0 0.0
        %380 = vmatpush1.msra.mxu0 0.0
        %381 = vmatprep.subr.mxu0 0.0
        %382 = vmatpush1.msra.mxu0 0.0
        %383 = vmatprep.subr.mxu0 0.0
        %384 = vmatpush1.msra.mxu0 0.0
        %385 = vmatprep.subr.mxu0 0.0
        %386 = vmatpush1.msra.mxu0 0.0
        %387 = vmatprep.subr.mxu0 0.0
        %388 = vmatpush1.msra.mxu0 0.0
        %389 = vmatprep.subr.mxu0 0.0
        %390 = vmatpush1.msra.mxu0 0.0
        %391 = vmatprep.subr.mxu0 0.0
        %392 = vmatpush1.msra.mxu0 0.0
        %393 = vmatprep.subr.mxu0 0.0
        %394 = vmatpush1.msra.mxu0 0.0
        %395 = vmatprep.subr.mxu0 0.0
        %396 = vmatpush1.msra.mxu0 %v288
        %397 = vmatprep.subr.mxu0 0.0
        %398 = vmatpush2.msra.mxu0 0.0
        %399 = vmatprep.subr.mxu0 0.0
        %400 = vmatpush2.msra.mxu0 0.0
        %401 = vmatprep.subr.mxu0 0.0
        %402 = vmatpush2.msra.mxu0 0.0
        %403 = vmatprep.subr.mxu0 0.0
        %404 = vmatpush2.msra.mxu0 0.0
        %405 = vmatprep.subr.mxu0 0.0
        %406 = vmatpush2.msra.mxu0 0.0
        %407 = vmatprep.subr.mxu0 0.0
        %408 = vmatpush2.msra.mxu0 0.0
        %409 = vmatprep.subr.mxu0 0.0
        %410 = vmatpush2.msra.mxu0 0.0
        %411 = vmatprep.subr.mxu0 0.0
        %412 = vmatpush2.msra.mxu0 0.0
        %413 = vmatprep.subr.mxu0 0.0
        %414 = vmatpush2.msra.mxu0 0.0
        %415 = vmatprep.subr.mxu0 0.0
        %416 = vmatpush2.msra.mxu0 0.0
        %417 = vmatprep.subr.mxu0 0.0
        %418 = vmatpush2.msra.mxu0 0.0
        %419 = vmatprep.subr.mxu0 0.0
        %420 = vmatpush2.msra.mxu0 0.0
        %421 = vmatprep.subr.mxu0 0.0
        %422 = vmatpush2.msra.mxu0 0.0
        %423 = vmatprep.subr.mxu0 0.0
        %424 = vmatpush2.msra.mxu0 0.0
        %425 = vmatprep.subr.mxu0 0.0
        %426 = vmatpush2.msra.mxu0 0.0
        %427 = vmatprep.subr.mxu0 0.0
        %428 = vmatpush2.msra.mxu0 0.0
        %429 = vmatprep.mubr.f32.mxu0 0.0
        %430 = vmatmul.mubr.f32.gmra.mxu0 %v292
        %v431 = vpop.f32.mrf.mxu0
        %v432 = vadd.f32 0.0, %v431
        %v433 = vpop.f32.mrf.mxu0
        %434 = vdwg.mxu0
        %v437 = vcombine.low %v361, %v363
        %439 = vst [vmem:[%s204] sm:$0xff] %v437
        %440 = vst [vmem:[%s204 + $0x8] sm:$0xf] %v432
        %s441 = sand.u32 %s117, 1
        %s442 = scalar_lea.sflag [#allocation3], %s441
        %s443 = sand.u32 %s117, 1
        %s444 = smul.addr %s443, 12
        %s445 = scalar_lea.vmem [#allocation2], %s444
        // Predicated region
        $region33: #{tpu_custom_call.1} parent=31 // pred_check
          %p446 = pneg %p127
        $region34: #{tpu_custom_call.1} parent=31 // pred_check_branch
          %448 = sbr.rel (%p446) target = $region36
        $region35: #{tpu_custom_call.1} parent=31 // pred_region
          %s449 = smul.u32 3, %s22
          %s451 = ssub.s32 192, 192
          %452 = vsyncadd %s442, %s451
          %s453 = smul.addr %s21, 3
          %s454 = sadd.s32 %s449, %s453
          %s455 = smul.addr %s454, 64
          %s456 = scalar_lea.hbm %s3, %s455
          %s458 = sshll.u32 %s445, 4
          %s459 = int_to_ptr.vmem [resolvable:$true] %s458
          %461 = dma.vmem_to_hbm [thread:$0]  %s459, 192, %s456, %s442
        $region36: #{tpu_custom_call.1} parent=31 // pred_fallthru
          _
      $region32: #{tpu_custom_call.1} parent=5 // pred_fallthru
        _
      %p462 = scmp.le.s32.totalorder 2, %s12
      // Predicated region
      $region37: #{tpu_custom_call.1} parent=5 // pred_check
        %p463 = pneg %p462
      $region38: #{tpu_custom_call.1} parent=5 // pred_check_branch
        %465 = sbr.rel (%p463) target = $region40
      $region39: #{tpu_custom_call.1} parent=5 // pred_region
        %s466 = ssub.s32 %s12, 2
        // Predicated region
        $region41: #{tpu_custom_call.1} parent=39 // pred_check
          %p467 = pneg %p133
        $region42: #{tpu_custom_call.1} parent=39 // pred_check_branch
          %469 = sbr.rel (%p467) target = $region44
        $region43: #{tpu_custom_call.1} parent=39 // pred_region
          %s470 = sand.u32 %s118, 1
          %s471 = scalar_lea.sflag [#allocation3], %s470
          %s472 = sand.u32 %s118, 1
          %s473 = smul.addr %s472, 12
          %s474 = scalar_lea.vmem [#allocation2], %s473
          %475 = dma.done %s471, 192
        $region44: #{tpu_custom_call.1} parent=39 // pred_fallthru
          _
      $region40: #{tpu_custom_call.1} parent=5 // pred_fallthru
        _
    $region6: #{tpu_custom_call.1} parent=1 // loop_footer
      %s16 = sadd.s32 1, %s12
    $region7: #{tpu_custom_call.1} parent=1 // loop_footer_branch
      %11 = sbr.rel target = $region3
    $region8: #{tpu_custom_call.1} parent=1 // loop_exit
      _
    %476 = vsyncpa [#allocation3], 1
    %s477 = scalar_lea.sflag [#allocation3], 1
    %478 = vsyncpa %s477, 1

</llo_original>
